<compile_context>
chip_gen: v5e
topology: v5e:2x2
jax: 0.10.0
libtpu: 0.0.40
codegen_flags: <defaults>
</compile_context>

<pallas_src>
import jax
import jax.numpy as jnp
from jax.experimental import pallas as pl
from jax.experimental.pallas import tpu as pltpu

LANE = 128
ALPHA = 1.0
GAMMA = 2.0  # gamma == 2 is implemented as an explicit square on the VPU


def _round_up(a, b):
    return (a + b - 1) // b * b


def _sublane_multiple(dtype):
    # f32 -> 8 sublanes, bf16 -> 16, int8/bool -> 32 (packed sublane tiling).
    return max(8, 32 // jnp.dtype(dtype).itemsize)


def _make_focal_kernel(*, rows_total, row_tile, chunk, alpha, hard_labels,
                       needs_mask):
    """Build a kernel for one (row_tile, 128) block of each input stream."""
    n_chunks = row_tile // chunk

    def kernel(x_ref, t_ref, o_ref):
        block_row0 = pl.program_id(0) * row_tile

        def body(i, acc):
            r0 = pl.multiple_of(i * chunk, chunk)
            x = x_ref[pl.ds(r0, chunk), :].astype(jnp.float32)
            t = t_ref[pl.ds(r0, chunk), :].astype(jnp.float32)

            if hard_labels:
                # Hard {0,1} targets: p_t is the probability of the true class.
                # Differs from exp(-clamped BCE) only when p_t < e^-100, i.e.
                # numerically irrelevant; drops 2 of 3 EUP ops per vreg.
                p_t = t * x + (1.0 - t) * (1.0 - x)
                bce = -jnp.maximum(jnp.log(p_t), -100.0)
                pt = p_t
            else:
                # Exact torch.binary_cross_entropy semantics (-100 log clamp),
                # valid for soft targets as well.
                log_x = jnp.maximum(jnp.log(x), -100.0)
                log_1mx = jnp.maximum(jnp.log(1.0 - x), -100.0)
                bce = -(t * log_x + (1.0 - t) * log_1mx)
                pt = jnp.exp(-bce)

            one_m_pt = 1.0 - pt
            fl = (one_m_pt * one_m_pt) * bce        # (1-pt)**2 on the VPU
            if alpha != 1.0:
                fl = alpha * fl

            if needs_mask:
                # Ragged last grid block: zero rows past the real array
                # (everything else is either real data or the exact-zero pad).
                row_idx = (block_row0 + r0
                           + jax.lax.broadcasted_iota(jnp.int32, (chunk, LANE), 0))
                fl = jnp.where(row_idx < rows_total, fl, 0.0)

            # Fold this chunk's rows into the (8,128) accumulator (VPU adds).
            return acc + fl.reshape(chunk // 8, 8, LANE).sum(axis=0)

        acc = jnp.zeros((8, LANE), jnp.float32)
        if n_chunks == 1:
            acc = body(jnp.int32(0), acc)
        else:
            acc = jax.lax.fori_loop(0, n_chunks, body, acc,
                                    unroll=min(4, n_chunks))
        o_ref[...] = acc.reshape(1, 8, LANE)

    return kernel


def focal_loss(inputs, targets, *, alpha=ALPHA, max_row_tile=8192,
               hard_labels=None):
    """Mean focal loss (alpha=1, gamma=2, logits=False path).

    inputs: probabilities in (0, 1); targets: labels, same shape (any rank).
    Both are streamed in their source dtype and cast to f32 inside the kernel.
    If `hard_labels` is None it is inferred from the targets dtype
    (integer/bool => hard-label fast path; float => exact soft-target formula).
    """
    assert inputs.shape == targets.shape, (inputs.shape, targets.shape)
    total_n = int(inputs.size)

    if hard_labels is None:
        hard_labels = bool(jnp.issubdtype(targets.dtype, jnp.integer)
                           or jnp.issubdtype(targets.dtype, jnp.bool_))

    x = inputs.reshape(-1)
    t = targets.reshape(-1)

    # Lane alignment only: pad by <=127 elements with (x=1, t=1), which
    # contributes exactly 0 focal loss.  No full-array padded copy.
    pad = (-total_n) % LANE
    if pad:
        x = jnp.concatenate([x, jnp.ones((pad,), x.dtype)])
        t = jnp.concatenate([t, jnp.ones((pad,), t.dtype)])
    rows = (total_n + pad) // LANE
    x2d = x.reshape(rows, LANE)
    t2d = t.reshape(rows, LANE)

    # Tile pick: big blocks (low per-step overhead), but always >= 2 grid
    # steps when there is enough work so the "parallel" axis can use both
    # v7x TensorCores.
    sub = max(_sublane_multiple(x.dtype), _sublane_multiple(t.dtype))
    if rows > sub:
        target_blocks = max(2, pl.cdiv(rows, max_row_tile))
    else:
        target_blocks = 1
    tile_guess = pl.cdiv(rows, target_blocks)
    gran = 64 if tile_guess >= 64 else sub          # keep chunk loop at 64 rows
    row_tile = min(_round_up(tile_guess, gran), _round_up(rows, gran))
    num_blocks = pl.cdiv(rows, row_tile)
    chunk = min(64, row_tile)                       # row_tile % chunk == 0
    needs_mask = (rows % row_tile) != 0

    kernel = _make_focal_kernel(rows_total=rows, row_tile=row_tile, chunk=chunk,
                                alpha=float(alpha), hard_labels=hard_labels,
                                needs_mask=needs_mask)

    # VMEM: 2 inputs x 2 pipeline buffers x row_tile x 128 x itemsize.
    # With f32 inputs and row_tile ~8K this is ~16 MiB; a 32 MiB limit covers
    # it on every generation (equals the v6e/v7x default scoped limit, raises
    # v5e's 16 MiB default so the big tile is usable there too).
    partials = pl.pallas_call(
        kernel,
        out_shape=jax.ShapeDtypeStruct((num_blocks, 8, LANE), jnp.float32),
        grid_spec=pltpu.PrefetchScalarGridSpec(
            num_scalar_prefetch=0,
            grid=(num_blocks,),
            in_specs=[
                pl.BlockSpec((row_tile, LANE), lambda i: (i, 0)),
                pl.BlockSpec((row_tile, LANE), lambda i: (i, 0)),
            ],
            out_specs=pl.BlockSpec((1, 8, LANE), lambda i: (i, 0, 0)),
        ),
        compiler_params=pltpu.CompilerParams(
            dimension_semantics=("parallel",),      # no carried state
            vmem_limit_bytes=32 * 1024 * 1024,
        ),
    )(x2d, t2d)

    # Tiny cross-block / cross-lane reduction and the mean, outside the kernel.
    return jnp.sum(partials) / total_n


def _focal_loss_ref(inputs, targets):
    x = inputs.astype(jnp.float32)
    t = targets.astype(jnp.float32)
    log_x = jnp.maximum(jnp.log(x), -100.0)
    log_1mx = jnp.maximum(jnp.log(1.0 - x), -100.0)
    bce = -(t * log_x + (1.0 - t) * log_1mx)
    pt = jnp.exp(-bce)
    fl = ALPHA * (1.0 - pt) ** GAMMA * bce
    return jnp.mean(fl)


if __name__ == "__main__":
    key = jax.random.PRNGKey(0)
    k1, k2 = jax.random.split(key)

    # NCHW: batch=2, channels=4, spatial=16x16
    shape = (2, 4, 16, 16)
    # inputs are probabilities in (0, 1); targets are binary labels
    inputs = jax.random.uniform(k1, shape, dtype=jnp.float32,
                                minval=1e-4, maxval=1.0 - 1e-4)
    targets = (jax.random.uniform(k2, shape, dtype=jnp.float32) > 0.5).astype(jnp.float32)

    ref = _focal_loss_ref(inputs, targets)

    # Exact (soft-target) path: identical math to torch BCE + focal weighting.
    loss = jax.block_until_ready(focal_loss(inputs, targets))
    assert jnp.allclose(loss, ref, rtol=1e-5, atol=1e-6), (loss, ref)

    # Hard-label fast path (1 log, no exp) — targets here are {0,1}, so it
    # matches the reference up to exp(log(p)) rounding.
    loss_hard = jax.block_until_ready(focal_loss(inputs, targets, hard_labels=True))
    assert jnp.allclose(loss_hard, ref, rtol=2e-4, atol=1e-6), (loss_hard, ref)

    print("KERNEL_OK")
</pallas_src>

<mosaic_0001>
module attributes {stable_mosaic.version = 11 : i64} {
  func.func @kernel(%arg0: i32, %arg1: memref<8x128xf32, #tpu.memory_space<vmem>>, %arg2: memref<8x128xf32, #tpu.memory_space<vmem>>, %arg3: memref<1x8x128xf32, #tpu.memory_space<vmem>>) attributes {dimension_semantics = [#tpu.dimension_semantics<parallel>], iteration_bounds = array<i64: 2>, scalar_prefetch = 0 : i64, scratch_operands = 0 : i64, tpu.core_type = #tpu.core_type<tc>, window_params = [{transform_indices = @transform_0, window_bounds = array<i64: 8, 128>}, {transform_indices = @transform_1, window_bounds = array<i64: 8, 128>}, {transform_indices = @transform_2, window_bounds = array<i64: 1, 8, 128>}]} {
    %cst = arith.constant 0.000000e+00 : f32
    %0 = vector.broadcast %cst : f32 to vector<8x128xf32>
    %c0_i32 = arith.constant 0 : i32
    %c8_i32 = arith.constant 8 : i32
    %1 = arith.muli %c0_i32, %c8_i32 : i32
    %2 = tpu.assume_multiple %1, 8 : i32
    %3 = arith.index_cast %2 : i32 to index
    %c0 = arith.constant 0 : index
    %4 = vector.load %arg1[%3, %c0] : memref<8x128xf32, #tpu.memory_space<vmem>>, vector<8x128xf32>
    %5 = arith.index_cast %2 : i32 to index
    %c0_0 = arith.constant 0 : index
    %6 = vector.load %arg2[%5, %c0_0] : memref<8x128xf32, #tpu.memory_space<vmem>>, vector<8x128xf32>
    %7 = math.log %4 : vector<8x128xf32>
    %cst_1 = arith.constant -1.000000e+02 : f32
    %8 = vector.broadcast %cst_1 : f32 to vector<8x128xf32>
    %9 = arith.maximumf %7, %8 : vector<8x128xf32>
    %cst_2 = arith.constant 1.000000e+00 : f32
    %10 = vector.broadcast %cst_2 : f32 to vector<8x128xf32>
    %11 = arith.subf %10, %4 : vector<8x128xf32>
    %12 = math.log %11 : vector<8x128xf32>
    %cst_3 = arith.constant -1.000000e+02 : f32
    %13 = vector.broadcast %cst_3 : f32 to vector<8x128xf32>
    %14 = arith.maximumf %12, %13 : vector<8x128xf32>
    %15 = arith.mulf %6, %9 : vector<8x128xf32>
    %cst_4 = arith.constant 1.000000e+00 : f32
    %16 = vector.broadcast %cst_4 : f32 to vector<8x128xf32>
    %17 = arith.subf %16, %6 : vector<8x128xf32>
    %18 = arith.mulf %17, %14 : vector<8x128xf32>
    %19 = arith.addf %15, %18 : vector<8x128xf32>
    %cst_5 = arith.constant 0.000000e+00 : f32
    %20 = vector.broadcast %cst_5 : f32 to vector<8x128xf32>
    %21 = arith.subf %20, %19 : vector<8x128xf32>
    %cst_6 = arith.constant 0.000000e+00 : f32
    %22 = vector.broadcast %cst_6 : f32 to vector<8x128xf32>
    %23 = arith.subf %22, %21 : vector<8x128xf32>
    %24 = math.exp %23 : vector<8x128xf32>
    %cst_7 = arith.constant 1.000000e+00 : f32
    %25 = vector.broadcast %cst_7 : f32 to vector<8x128xf32>
    %26 = arith.subf %25, %24 : vector<8x128xf32>
    %27 = arith.mulf %26, %26 : vector<8x128xf32>
    %28 = arith.mulf %27, %21 : vector<8x128xf32>
    %29 = vector.shape_cast %28 : vector<8x128xf32> to vector<1x8x128xf32>
    %cst_8 = arith.constant dense<0.000000e+00> : vector<8x128xf32>
    %30 = vector.multi_reduction <add>, %29, %cst_8 [0] : vector<1x8x128xf32> to vector<8x128xf32>
    %31 = arith.addf %0, %30 : vector<8x128xf32>
    %32 = vector.shape_cast %31 : vector<8x128xf32> to vector<1x8x128xf32>
    %c0_9 = arith.constant 0 : index
    %c0_10 = arith.constant 0 : index
    %c0_11 = arith.constant 0 : index
    %33 = vector.load %arg3[%c0_9, %c0_10, %c0_11] : memref<1x8x128xf32, #tpu.memory_space<vmem>>, vector<1x8x128xf32>
    tpu.vector_store %arg3[%c0_9, %c0_10, %c0_11], %32 {strides = array<i32>} : memref<1x8x128xf32, #tpu.memory_space<vmem>>, vector<1x8x128xf32>,
    return
  }
  func.func @transform_0(%arg0: i32) -> (i32, i32) {
    %c0_i32 = arith.constant 0 : i32
    %c0_i32_0 = arith.constant 0 : i32
    return %arg0, %c0_i32 : i32, i32
  }
  func.func @transform_1(%arg0: i32) -> (i32, i32) {
    %c0_i32 = arith.constant 0 : i32
    %c0_i32_0 = arith.constant 0 : i32
    return %arg0, %c0_i32 : i32, i32
  }
  func.func @transform_2(%arg0: i32) -> (i32, i32, i32) {
    %c0_i32 = arith.constant 0 : i32
    %c0_i32_0 = arith.constant 0 : i32
    %c0_i32_1 = arith.constant 0 : i32
    return %arg0, %c0_i32, %c0_i32_0 : i32, i32, i32
  }
}

</mosaic_0001>

<llo_original>
// kernel: tpu_custom_call.1
$region0: #{tpu_custom_call.1}
  #allocation0 [shape = 'u32[]', space=smem, size = 0x4, offset = 0x4, fixed_abs, tag = 'smem constant byte address 0x4 - core index']
  #allocation1 [shape = 'u32[72,128]{1,0:T(1,128)}', space=vmem, size = 0x9000, scoped, tag = 'internal scratch']
  %s0 = inlined_call_operand.hbm [shape: f32[16,128], index: 0, kind: input, shape index: {}]
  %s1 = inlined_call_operand.hbm [shape: f32[16,128], index: 1, kind: input, shape index: {}]
  %s2 = inlined_call_operand.hbm [shape: f32[2,8,128], index: 2, kind: output, shape index: {}]
  %s3 = sld [smem:[#allocation0]]
  $region49: #{tpu_custom_call.1} parent=0
    _
  %s5 = ssub.s32 1, %s3
  %s6 = scalar_select 0, %s5, %s3
  $region1: #{tpu_custom_call.1} parent=0
    #allocation2 [shape = 'u8[8192]{0}', space=vmem, size = 0x2000, scoped, tag = 'input window, operand 0']
    #allocation3 [shape = 's32[2]{0}', space=sflag, size = 0x8, scoped, tag = 'scoped memory for tpu_custom_call.1']
    #allocation4 [shape = 's32[2]{0}', space=sflag, size = 0x8, scoped, tag = 'scoped memory for tpu_custom_call.1']
    #allocation5 [shape = 'u8[8192]{0}', space=vmem, size = 0x2000, scoped, tag = 'input window, operand 1']
    #allocation6 [shape = 's32[2]{0}', space=sflag, size = 0x8, scoped, tag = 'scoped memory for tpu_custom_call.1']
    #allocation7 [shape = 'u8[8192]{0}', space=vmem, size = 0x2000, scoped, tag = 'output window, operand 0']
    %7 = vsyncpa [#allocation3], 0
    %s8 = scalar_lea.sflag [#allocation3], 1
    %9 = vsyncpa %s8, 0
    %10 = vsyncpa [#allocation6], 0
    %s11 = scalar_lea.sflag [#allocation6], 1
    %12 = vsyncpa %s11, 0
    %13 = vsyncpa [#allocation4], 0
    %s14 = scalar_lea.sflag [#allocation4], 1
    %15 = vsyncpa %s14, 0
    loop: start=0, step=1, limit=4
    $region2: #{tpu_custom_call.1} parent=1 // loop_pre_header
      _
    $region3: #{tpu_custom_call.1} parent=1 // loop_header
      %s17 = sphi 0, %s21
      %p18 = scmp.ge.s32.totalorder %s17, 4
      %s27 = sphi 0, %s29
      %s30 = sphi 0, %s27
      %s31 = sphi 0, %s30
      %s47 = sphi 0, %s31
      %s53 = sphi 0, %s55
      %s56 = sphi 0, %s53
      %s57 = sphi 0, %s56
      %s73 = sphi 0, %s57
      %s79 = sphi 0, %s81
      %s82 = sphi 0, %s79
      %s83 = sphi 0, %s82
      %s99 = sphi 0, %s83
    $region4: #{tpu_custom_call.1} parent=1 // loop_header_branch
      %20 = sbr.rel (%p18) target = $region8
    $region5: #{tpu_custom_call.1} parent=1 // loop_body
      %s22 = ssub.s32 %s17, 1
      %s23 = ssub.s32 %s17, 2
      %s24 = sadd.s32 %s17, 1
      %s25 = ssub.s32 %s17, %s24
      %p26 = scmp.eq.s32.totalorder %s25, 0
      %s28 = sadd.s32 %s27, 1
      %s29 = scalar_select %p26, %s27, %s28
      %p32 = pneg %p26
      %p33 = scmp.eq.s32.totalorder %s17, 1
      %p34 = por %p32, %p33
      %p35 = scmp.ne.s32.totalorder %s27, %s30
      %p36 = scmp.eq.s32.totalorder %s17, 0
      %p37 = por %p35, %p36
      %p38 = scmp.ne.s32.totalorder %s27, %s30
      %p39 = scmp.eq.s32.totalorder %s22, 1
      %p40 = por %p38, %p39
      %p41 = scmp.ne.s32.totalorder %s30, %s31
      %p42 = scmp.eq.s32.totalorder %s22, 0
      %p43 = por %p41, %p42
      %p44 = scmp.ne.s32.totalorder %s30, %s31
      %p45 = scmp.eq.s32.totalorder %s23, 1
      %p46 = por %p44, %p45
      %p48 = scmp.ne.s32.totalorder %s31, %s47
      %p49 = scmp.eq.s32.totalorder %s23, 0
      %p50 = por %p48, %p49
      %s51 = ssub.s32 %s17, %s24
      %p52 = scmp.eq.s32.totalorder %s51, 0
      %s54 = sadd.s32 %s53, 1
      %s55 = scalar_select %p52, %s53, %s54
      %p58 = pneg %p52
      %p59 = scmp.eq.s32.totalorder %s17, 1
      %p60 = por %p58, %p59
      %p61 = scmp.ne.s32.totalorder %s53, %s56
      %p62 = scmp.eq.s32.totalorder %s17, 0
      %p63 = por %p61, %p62
      %p64 = scmp.ne.s32.totalorder %s53, %s56
      %p65 = scmp.eq.s32.totalorder %s22, 1
      %p66 = por %p64, %p65
      %p67 = scmp.ne.s32.totalorder %s56, %s57
      %p68 = scmp.eq.s32.totalorder %s22, 0
      %p69 = por %p67, %p68
      %p70 = scmp.ne.s32.totalorder %s56, %s57
      %p71 = scmp.eq.s32.totalorder %s23, 1
      %p72 = por %p70, %p71
      %p74 = scmp.ne.s32.totalorder %s57, %s73
      %p75 = scmp.eq.s32.totalorder %s23, 0
      %p76 = por %p74, %p75
      %s77 = ssub.s32 %s17, %s24
      %p78 = scmp.eq.s32.totalorder %s77, 0
      %s80 = sadd.s32 %s79, 1
      %s81 = scalar_select %p78, %s79, %s80
      %p84 = pneg %p78
      %p85 = scmp.eq.s32.totalorder %s17, 1
      %p86 = por %p84, %p85
      %p87 = scmp.ne.s32.totalorder %s79, %s82
      %p88 = scmp.eq.s32.totalorder %s17, 0
      %p89 = por %p87, %p88
      %p90 = scmp.ne.s32.totalorder %s79, %s82
      %p91 = scmp.eq.s32.totalorder %s22, 1
      %p92 = por %p90, %p91
      %p93 = scmp.ne.s32.totalorder %s82, %s83
      %p94 = scmp.eq.s32.totalorder %s22, 0
      %p95 = por %p93, %p94
      %p96 = scmp.ne.s32.totalorder %s82, %s83
      %p97 = scmp.eq.s32.totalorder %s23, 1
      %p98 = por %p96, %p97
      %p100 = scmp.ne.s32.totalorder %s83, %s99
      %p101 = scmp.eq.s32.totalorder %s23, 0
      %p102 = por %p100, %p101
      %p103 = scmp.le.s32.totalorder 1, %s17
      %p104 = scmp.lt.s32.totalorder %s17, 3
      %p105 = pnand %p103, %p104
      %p106 = pneg %p105
      // Predicated region
      $region9: #{tpu_custom_call.1} parent=5 // pred_check
        _
      $region10: #{tpu_custom_call.1} parent=5 // pred_check_branch
        %108 = sbr.rel (%p105) target = $region12
      $region11: #{tpu_custom_call.1} parent=5 // pred_region
        %s109 = ssub.s32 %s17, 1
      $region12: #{tpu_custom_call.1} parent=5 // pred_fallthru
        _
      %p110 = scmp.lt.s32.totalorder %s17, 2
      // Predicated region
      $region13: #{tpu_custom_call.1} parent=5 // pred_check
        %p111 = pneg %p110
      $region14: #{tpu_custom_call.1} parent=5 // pred_check_branch
        %113 = sbr.rel (%p111) target = $region16
      $region15: #{tpu_custom_call.1} parent=5 // pred_region
        // Predicated region
        $region17: #{tpu_custom_call.1} parent=15 // pred_check
          %p114 = pneg %p37
        $region18: #{tpu_custom_call.1} parent=15 // pred_check_branch
          %116 = sbr.rel (%p114) target = $region20
        $region19: #{tpu_custom_call.1} parent=15 // pred_region
          %s117 = sand.u32 %s27, 1
          %s118 = scalar_lea.sflag [#allocation3], %s117
          %s119 = sand.u32 %s27, 1
          %s120 = smul.addr %s119, 8
          %s121 = scalar_lea.vmem [#allocation2], %s120
          %123 = vsyncadd %s118, 0
          %s124 = smul.addr %s17, 8
          %s125 = scalar_lea.hbm %s0, %s124
          %s127 = sshll.u32 %s125, 4
          %s128 = int_to_ptr.hbm [resolvable:$true] %s127
          %s129 = sshll.u32 %s121, 4
          %s130 = int_to_ptr.vmem [resolvable:$true] %s129
          %132 = dma.hbm_to_vmem [thread:$0]  %s128, 128, %s130, %s118
        $region20: #{tpu_custom_call.1} parent=15 // pred_fallthru
          _
        // Predicated region
        $region21: #{tpu_custom_call.1} parent=15 // pred_check
          %p133 = pneg %p63
        $region22: #{tpu_custom_call.1} parent=15 // pred_check_branch
          %135 = sbr.rel (%p133) target = $region24
        $region23: #{tpu_custom_call.1} parent=15 // pred_region
          %s136 = sand.u32 %s53, 1
          %s137 = scalar_lea.sflag [#allocation6], %s136
          %s138 = sand.u32 %s53, 1
          %s139 = smul.addr %s138, 8
          %s140 = scalar_lea.vmem [#allocation5], %s139
          %142 = vsyncadd %s137, 0
          %s143 = smul.addr %s17, 8
          %s144 = scalar_lea.hbm %s1, %s143
          %s146 = sshll.u32 %s144, 4
          %s147 = int_to_ptr.hbm [resolvable:$true] %s146
          %s148 = sshll.u32 %s140, 4
          %s149 = int_to_ptr.vmem [resolvable:$true] %s148
          %151 = dma.hbm_to_vmem [thread:$0]  %s147, 128, %s149, %s137
        $region24: #{tpu_custom_call.1} parent=15 // pred_fallthru
          _
      $region16: #{tpu_custom_call.1} parent=5 // pred_fallthru
        _
      %p152 = scmp.le.s32.totalorder 1, %s17
      %p153 = scmp.lt.s32.totalorder %s17, 3
      %p154 = pnand %p152, %p153
      %p155 = pneg %p154
      // Predicated region
      $region25: #{tpu_custom_call.1} parent=5 // pred_check
        _
      $region26: #{tpu_custom_call.1} parent=5 // pred_check_branch
        %157 = sbr.rel (%p154) target = $region28
      $region27: #{tpu_custom_call.1} parent=5 // pred_region
        %s158 = ssub.s32 %s17, 1
        %s159 = sand.u32 %s30, 1
        %s160 = scalar_lea.sflag [#allocation3], %s159
        %s161 = sand.u32 %s30, 1
        %s162 = smul.addr %s161, 8
        %s163 = scalar_lea.vmem [#allocation2], %s162
        // Predicated region
        $region29: #{tpu_custom_call.1} parent=27 // pred_check
          %p164 = pneg %p43
        $region30: #{tpu_custom_call.1} parent=27 // pred_check_branch
          %166 = sbr.rel (%p164) target = $region32
        $region31: #{tpu_custom_call.1} parent=27 // pred_region
          %168 = dma.done %s160, 128
        $region32: #{tpu_custom_call.1} parent=27 // pred_fallthru
          _
        %s169 = sand.u32 %s56, 1
        %s170 = scalar_lea.sflag [#allocation6], %s169
        %s171 = sand.u32 %s56, 1
        %s172 = smul.addr %s171, 8
        %s173 = scalar_lea.vmem [#allocation5], %s172
        // Predicated region
        $region33: #{tpu_custom_call.1} parent=27 // pred_check
          %p174 = pneg %p69
        $region34: #{tpu_custom_call.1} parent=27 // pred_check_branch
          %176 = sbr.rel (%p174) target = $region36
        $region35: #{tpu_custom_call.1} parent=27 // pred_region
          %178 = dma.done %s170, 128
        $region36: #{tpu_custom_call.1} parent=27 // pred_fallthru
          _
        %s179 = sand.u32 %s30, 1
        %s180 = scalar_lea.sflag [#allocation3], %s179
        %s181 = sand.u32 %s30, 1
        %s182 = smul.addr %s181, 8
        %s183 = scalar_lea.vmem [#allocation2], %s182
        %p184 = pneg %p43
        %p185 = pneg %p40
        %s186 = sand.u32 %s56, 1
        %s187 = scalar_lea.sflag [#allocation6], %s186
        %s188 = sand.u32 %s56, 1
        %s189 = smul.addr %s188, 8
        %s190 = scalar_lea.vmem [#allocation5], %s189
        %p191 = pneg %p69
        %p192 = pneg %p66
        %p193 = pneg %p95
        %p194 = pneg %p92
        %s195 = sand.u32 %s82, 1
        %s196 = scalar_lea.sflag [#allocation4], %s195
        %s197 = sand.u32 %s82, 1
        %s198 = smul.addr %s197, 8
        %s199 = scalar_lea.vmem [#allocation7], %s198
        %v200 = vld [vmem:[%s163] sm:$0xff]
        %v201 = vld [vmem:[%s173] sm:$0xff]
        %v202 = vlog2.pop %v200
        %v203 = vmul.f32 %v202, 0.6931472
        %v204 = vmax.f32 %v203, -100.0
        %v205 = vsub.f32 1.0, %v200
        %v206 = vlog2.pop %v205
        %v207 = vmul.f32 %v206, 0.6931472
        %v208 = vmax.f32 %v207, -100.0
        %v209 = vmul.f32 %v201, %v204
        %v210 = vsub.f32 1.0, %v201
        %v211 = vmul.f32 %v210, %v208
        %v212 = vadd.f32 %v209, %v211
        %v213 = vsub.f32 0.0, %v212
        %v214 = vsub.f32 0.0, %v213
        %v215 = vmul.f32 %v214, 1.442695
        %v216 = vpow.pop %v215
        %v217 = vsub.f32 1.0, %v216
        %v218 = vmul.f32 %v217, %v217
        %v219 = vmul.f32 %v218, %v213
        %v220 = vadd.f32 %v219, 0.0
        %v221 = vadd.f32 %v220, 0.0
        %222 = vst [vmem:[%s199] sm:$0xff] %v221
        %s223 = sand.u32 %s82, 1
        %s224 = scalar_lea.sflag [#allocation4], %s223
        %s225 = sand.u32 %s82, 1
        %s226 = smul.addr %s225, 8
        %s227 = scalar_lea.vmem [#allocation7], %s226
        // Predicated region
        $region37: #{tpu_custom_call.1} parent=27 // pred_check
          %p228 = pneg %p92
        $region38: #{tpu_custom_call.1} parent=27 // pred_check_branch
          %230 = sbr.rel (%p228) target = $region40
        $region39: #{tpu_custom_call.1} parent=27 // pred_region
          %232 = vsyncadd %s224, 0
          %s233 = smul.addr %s22, 8
          %s234 = scalar_lea.hbm %s2, %s233
          %s236 = sshll.u32 %s227, 4
          %s237 = int_to_ptr.vmem [resolvable:$true] %s236
          %s238 = sshll.u32 %s234, 4
          %s239 = int_to_ptr.hbm [resolvable:$true] %s238
          %241 = dma.vmem_to_hbm [thread:$0]  %s237, 128, %s239, %s224
        $region40: #{tpu_custom_call.1} parent=27 // pred_fallthru
          _
      $region28: #{tpu_custom_call.1} parent=5 // pred_fallthru
        _
      %p242 = scmp.le.s32.totalorder 2, %s17
      // Predicated region
      $region41: #{tpu_custom_call.1} parent=5 // pred_check
        %p243 = pneg %p242
      $region42: #{tpu_custom_call.1} parent=5 // pred_check_branch
        %245 = sbr.rel (%p243) target = $region44
      $region43: #{tpu_custom_call.1} parent=5 // pred_region
        %s246 = ssub.s32 %s17, 2
        // Predicated region
        $region45: #{tpu_custom_call.1} parent=43 // pred_check
          %p247 = pneg %p98
        $region46: #{tpu_custom_call.1} parent=43 // pred_check_branch
          %249 = sbr.rel (%p247) target = $region48
        $region47: #{tpu_custom_call.1} parent=43 // pred_region
          %s250 = sand.u32 %s83, 1
          %s251 = scalar_lea.sflag [#allocation4], %s250
          %s252 = sand.u32 %s83, 1
          %s253 = smul.addr %s252, 8
          %s254 = scalar_lea.vmem [#allocation7], %s253
          %256 = dma.done %s251, 128
        $region48: #{tpu_custom_call.1} parent=43 // pred_fallthru
          _
      $region44: #{tpu_custom_call.1} parent=5 // pred_fallthru
        _
    $region6: #{tpu_custom_call.1} parent=1 // loop_footer
      %s21 = sadd.s32 1, %s17
    $region7: #{tpu_custom_call.1} parent=1 // loop_footer_branch
      %16 = sbr.rel target = $region3
    $region8: #{tpu_custom_call.1} parent=1 // loop_exit
      _
    %257 = vsyncpa [#allocation3], 1
    %s258 = scalar_lea.sflag [#allocation3], 1
    %259 = vsyncpa %s258, 1
    %260 = vsyncpa [#allocation6], 1
    %s261 = scalar_lea.sflag [#allocation6], 1
    %262 = vsyncpa %s261, 1
    %263 = vsyncpa [#allocation4], 1
    %s264 = scalar_lea.sflag [#allocation4], 1
    %265 = vsyncpa %s264, 1

</llo_original>
